<compile_context>
chip_gen: v6e
topology: v6e:2x2x1
jax: 0.10.0
libtpu: 0.0.40
codegen_flags: <defaults>
</compile_context>

<pallas_src>
import math

import jax
import jax.numpy as jnp
from jax.experimental import pallas as pl
from jax.experimental.pallas import tpu as pltpu


# ---- static model dimensions (toy-sized but forward-consistent) ----
B, C, H, W = 2, 3, 32, 32
PATCH = 8
PATCH_DIM = C * PATCH * PATCH               # 192
PATCH_DIM_PAD = 256                         # lane-pad 192 -> 256
NUM_PATCHES = (H // PATCH) * (W // PATCH)   # 16
VISION_WIDTH = 256
EMBED_DIM = 512                             # module default embed_dim
NUM_TOKENS = 5 + 2                          # CLASS = bin_num + 2
TOKENS_PAD = 128                            # lane-pad the one-hot token axis
GENE_DIM = 200                              # PerformerLM dim
SEQ_LEN = 8                                 # small stand-in for gene_num + 1
N_GENE = 4


def _vmem():
    return pl.BlockSpec(memory_space=pltpu.MemorySpace.VMEM)


def _smem():
    return pl.BlockSpec(memory_space=pltpu.MemorySpace.SMEM)


# --------------------------------------------------------------------------
# Single fused kernel: whole forward, everything VMEM-resident.
# --------------------------------------------------------------------------
def _fused_forward_kernel(scale_ref, tokens_ref, cls_ref,
                          w_img_ref, b_img_ref,
                          w_gene_ref, b_gene_ref,
                          logits_ref):
    # ---------------- image branch (encorder_image surrogate) --------------
    # cls is the patch-mean pooled, lane-padded image vector; w_img is the
    # init-time-folded (patch_embed @ vision_proj) weight (bf16 storage).
    img = jnp.dot(cls_ref[...], w_img_ref[...].astype(jnp.float32),
                  preferred_element_type=jnp.float32) + b_img_ref[...]   # (B, E)
    ss_i = jnp.sum(img * img, axis=-1, keepdims=True)
    # F.normalize clamps the norm at 1e-12 -> clamp the squared norm at 1e-24.
    img_feat = img * jax.lax.rsqrt(jnp.maximum(ss_i, 1e-24))

    # ---------------- gene branch (encorder_gene surrogate) ----------------
    # One-hot the flattened (N*S, 1) token ids against a lane iota, then
    # reduce per gene (mean over SEQ_LEN) with a constant segment matrix on
    # the MXU.  No serial scalar loop.
    lane = jax.lax.broadcasted_iota(
        jnp.int32, (N_GENE * SEQ_LEN, TOKENS_PAD), 1)
    onehot = (tokens_ref[...] == lane).astype(jnp.float32)      # (N*S, 128)

    seg_row = jax.lax.broadcasted_iota(
        jnp.int32, (N_GENE, N_GENE * SEQ_LEN), 0)
    seg_col = jax.lax.broadcasted_iota(
        jnp.int32, (N_GENE, N_GENE * SEQ_LEN), 1)
    in_seg = (seg_col >= seg_row * SEQ_LEN) & (seg_col < (seg_row + 1) * SEQ_LEN)
    seg = in_seg.astype(jnp.float32) * (1.0 / SEQ_LEN)          # (N, N*S)

    counts_mean = jnp.dot(seg, onehot,
                          preferred_element_type=jnp.float32)   # (N, 128)

    # w_gene is the init-time-folded (token_emb @ gene_proj); b_gene already
    # carries the sequence-mean positional embedding through the projection.
    gene = jnp.dot(counts_mean, w_gene_ref[...].astype(jnp.float32),
                   preferred_element_type=jnp.float32) + b_gene_ref[...]  # (N, E)
    ss_g = jnp.sum(gene * gene, axis=-1, keepdims=True)
    # Reference divides by the raw norm (no eps): gene_embeds / norm(...).
    gene_feat = gene * jax.lax.rsqrt(ss_g)

    # ---------------- contrastive logits ------------------------------------
    # exp(logit_scale) arrives pre-computed; apply to the smaller operand.
    scaled_img = img_feat * scale_ref[0]
    logits_ref[...] = jax.lax.dot_general(
        scaled_img, gene_feat,
        dimension_numbers=(((1,), (1,)), ((), ())),
        preferred_element_type=jnp.float32)


# --------------------------------------------------------------------------
# Wrapper glue: patchify + mean-pool (+ lane pad), parameter init, forward
# --------------------------------------------------------------------------
def patch_mean_pad(image, patch, pad_to):
    # image: (B, C, H, W) -> mean over patches -> (B, pad_to)
    b, c, h, w = image.shape
    ph, pw = h // patch, w // patch
    x = image.reshape(b, c, ph, patch, pw, patch)
    x = x.transpose(0, 2, 4, 1, 3, 5)
    x = x.reshape(b, ph * pw, c * patch * patch)
    x = jnp.mean(x, axis=1)                          # (B, PATCH_DIM)
    extra = pad_to - c * patch * patch
    if extra > 0:
        x = jnp.pad(x, ((0, 0), (0, extra)))
    return x


def init_params(key):
    ks = jax.random.split(key, 5)
    s = 0.02

    # raw (unfolded) parameters, all f32
    w_patch = jax.random.normal(ks[0], (PATCH_DIM, VISION_WIDTH), jnp.float32) * s
    b_patch = jnp.zeros((VISION_WIDTH,), jnp.float32)
    w_vproj = jax.random.normal(ks[1], (VISION_WIDTH, EMBED_DIM), jnp.float32) * s
    b_vproj = jnp.zeros((EMBED_DIM,), jnp.float32)
    token_emb = jax.random.normal(ks[2], (NUM_TOKENS, GENE_DIM), jnp.float32) * s
    pos_emb = jax.random.normal(ks[3], (SEQ_LEN, GENE_DIM), jnp.float32) * s
    w_gproj = jax.random.normal(ks[4], (GENE_DIM, EMBED_DIM), jnp.float32) * s
    b_gproj = jnp.zeros((EMBED_DIM,), jnp.float32)

    # ---- init-time folding (f32 products, single cast to bf16 storage) ----
    # Exact only for the linear surrogate encoders (see TODO at top).
    w_img = w_patch @ w_vproj                                    # (192, 512)
    b_img = b_patch @ w_vproj + b_vproj                          # (512,)
    w_gene = token_emb @ w_gproj                                 # (7, 512)
    b_gene = jnp.mean(pos_emb, axis=0) @ w_gproj + b_gproj       # (512,)

    def pad_rows(a, rows):
        return jnp.pad(a, ((0, rows - a.shape[0]), (0, 0)))

    return {
        # MXU weights stored bf16 (HBM-byte savings only); widened to f32
        # in-kernel, f32 accumulation.
        "w_img": pad_rows(w_img, PATCH_DIM_PAD).astype(jnp.bfloat16),   # (256, 512)
        "b_img": b_img.reshape(1, EMBED_DIM),
        "w_gene": pad_rows(w_gene, TOKENS_PAD).astype(jnp.bfloat16),    # (128, 512)
        "b_gene": b_gene.reshape(1, EMBED_DIM),
        "logit_scale": jnp.full((1,), math.log(1.0 / 0.07), jnp.float32),
    }


@jax.jit
def mymodel_forward(params, image, gene_tokens):
    cls = patch_mean_pad(image, PATCH, PATCH_DIM_PAD)            # (B, 256) f32
    tokens_col = gene_tokens.reshape(-1, 1).astype(jnp.int32)    # (N*S, 1)
    scale_exp = jnp.exp(params["logit_scale"])                   # (1,) f32

    return pl.pallas_call(
        _fused_forward_kernel,
        out_shape=jax.ShapeDtypeStruct(
            (image.shape[0], gene_tokens.shape[0]), jnp.float32),
        in_specs=[_smem(),            # exp(logit_scale)
                  _vmem(),            # gene tokens (N*S, 1) int32
                  _vmem(),            # cls (B, PATCH_DIM_PAD)
                  _vmem(), _vmem(),   # w_img, b_img
                  _vmem(), _vmem()],  # w_gene, b_gene
        out_specs=_vmem(),
    )(scale_exp, tokens_col, cls,
      params["w_img"], params["b_img"],
      params["w_gene"], params["b_gene"])


if __name__ == "__main__":
    key = jax.random.PRNGKey(0)
    k_img, k_gene, k_par = jax.random.split(key, 3)

    image = jax.random.normal(k_img, (B, C, H, W), jnp.float32)
    gene_tokens = jax.random.randint(k_gene, (N_GENE, SEQ_LEN), 0, NUM_TOKENS)

    params = init_params(k_par)

    logits = mymodel_forward(params, image, gene_tokens)
    logits = jax.block_until_ready(logits)
    assert logits.shape == (B, N_GENE), logits.shape
    assert bool(jnp.all(jnp.isfinite(logits)))
    print("KERNEL_OK")
</pallas_src>

<mosaic_0001>
module attributes {stable_mosaic.version = 11 : i64} {
  func.func @_fused_forward_kernel(%arg0: memref<1xf32, #tpu.memory_space<smem>>, %arg1: memref<32x1xi32, #tpu.memory_space<vmem>>, %arg2: memref<2x256xf32, #tpu.memory_space<vmem>>, %arg3: memref<256x512xbf16, #tpu.memory_space<vmem>>, %arg4: memref<1x512xf32, #tpu.memory_space<vmem>>, %arg5: memref<128x512xbf16, #tpu.memory_space<vmem>>, %arg6: memref<1x512xf32, #tpu.memory_space<vmem>>, %arg7: memref<2x4xf32, #tpu.memory_space<vmem>>) attributes {dimension_semantics = [], scalar_prefetch = 0 : i64, scratch_operands = 0 : i64, tpu.core_type = #tpu.core_type<tc>} {
    %c0 = arith.constant 0 : index
    %c0_0 = arith.constant 0 : index
    %0 = vector.load %arg2[%c0, %c0_0] : memref<2x256xf32, #tpu.memory_space<vmem>>, vector<2x256xf32>
    %c0_1 = arith.constant 0 : index
    %c0_2 = arith.constant 0 : index
    %1 = vector.load %arg3[%c0_1, %c0_2] : memref<256x512xbf16, #tpu.memory_space<vmem>>, vector<256x512xbf16>
    %2 = arith.extf %1 : vector<256x512xbf16> to vector<256x512xf32>
    %cst = arith.constant dense<0.000000e+00> : vector<2x512xf32>
    %3 = tpu.matmul %0, %2, %cst {dimension_numbers = #tpu.dot_dimension_numbers<[1], [0], [0], [1], [0, 0, 1, 1], [], []>} : vector<2x256xf32>, vector<256x512xf32>, vector<2x512xf32> -> vector<2x512xf32>
    %c0_3 = arith.constant 0 : index
    %c0_4 = arith.constant 0 : index
    %4 = vector.load %arg4[%c0_3, %c0_4] : memref<1x512xf32, #tpu.memory_space<vmem>>, vector<1x512xf32>
    %5 = vector.broadcast %4 : vector<1x512xf32> to vector<2x512xf32>
    %6 = arith.addf %3, %5 : vector<2x512xf32>
    %7 = arith.mulf %6, %6 : vector<2x512xf32>
    %cst_5 = arith.constant dense<0.000000e+00> : vector<2xf32>
    %8 = vector.multi_reduction <add>, %7, %cst_5 [1] : vector<2x512xf32> to vector<2xf32>
    %9 = vector.shape_cast %8 : vector<2xf32> to vector<2x1xf32>
    %cst_6 = arith.constant 1.000000e-24 : f32
    %10 = vector.broadcast %cst_6 : f32 to vector<2x1xf32>
    %11 = arith.maximumf %9, %10 : vector<2x1xf32>
    %12 = math.rsqrt %11 : vector<2x1xf32>
    %13 = vector.broadcast %12 : vector<2x1xf32> to vector<2x512xf32>
    %14 = arith.mulf %6, %13 : vector<2x512xf32>
    %15 = tpu.iota {dimensions = array<i32: 1>} : vector<32x128xi32>
    %c0_7 = arith.constant 0 : index
    %c0_8 = arith.constant 0 : index
    %16 = vector.load %arg1[%c0_7, %c0_8] : memref<32x1xi32, #tpu.memory_space<vmem>>, vector<32x1xi32>
    %17 = vector.broadcast %16 : vector<32x1xi32> to vector<32x128xi32>
    %18 = arith.cmpi eq, %17, %15 : vector<32x128xi32>
    %19 = arith.extui %18 : vector<32x128xi1> to vector<32x128xi32>
    %20 = arith.sitofp %19 : vector<32x128xi32> to vector<32x128xf32>
    %21 = tpu.iota {dimensions = array<i32: 0>} : vector<4x32xi32>
    %22 = tpu.iota {dimensions = array<i32: 1>} : vector<4x32xi32>
    %c8_i32 = arith.constant 8 : i32
    %23 = vector.broadcast %c8_i32 : i32 to vector<4x32xi32>
    %24 = arith.muli %21, %23 : vector<4x32xi32>
    %25 = arith.cmpi sge, %22, %24 : vector<4x32xi32>
    %c1_i32 = arith.constant 1 : i32
    %26 = vector.broadcast %c1_i32 : i32 to vector<4x32xi32>
    %27 = arith.addi %21, %26 : vector<4x32xi32>
    %c8_i32_9 = arith.constant 8 : i32
    %28 = vector.broadcast %c8_i32_9 : i32 to vector<4x32xi32>
    %29 = arith.muli %27, %28 : vector<4x32xi32>
    %30 = arith.cmpi slt, %22, %29 : vector<4x32xi32>
    %31 = arith.andi %25, %30 : vector<4x32xi1>
    %32 = arith.extui %31 : vector<4x32xi1> to vector<4x32xi32>
    %33 = arith.sitofp %32 : vector<4x32xi32> to vector<4x32xf32>
    %cst_10 = arith.constant 1.250000e-01 : f32
    %34 = vector.broadcast %cst_10 : f32 to vector<4x32xf32>
    %35 = arith.mulf %33, %34 : vector<4x32xf32>
    %cst_11 = arith.constant dense<0.000000e+00> : vector<4x128xf32>
    %36 = tpu.matmul %35, %20, %cst_11 {dimension_numbers = #tpu.dot_dimension_numbers<[1], [0], [0], [1], [0, 0, 1, 1], [], []>} : vector<4x32xf32>, vector<32x128xf32>, vector<4x128xf32> -> vector<4x128xf32>
    %c0_12 = arith.constant 0 : index
    %c0_13 = arith.constant 0 : index
    %37 = vector.load %arg5[%c0_12, %c0_13] : memref<128x512xbf16, #tpu.memory_space<vmem>>, vector<128x512xbf16>
    %38 = arith.extf %37 : vector<128x512xbf16> to vector<128x512xf32>
    %cst_14 = arith.constant dense<0.000000e+00> : vector<4x512xf32>
    %39 = tpu.matmul %36, %38, %cst_14 {dimension_numbers = #tpu.dot_dimension_numbers<[1], [0], [0], [1], [0, 0, 1, 1], [], []>} : vector<4x128xf32>, vector<128x512xf32>, vector<4x512xf32> -> vector<4x512xf32>
    %c0_15 = arith.constant 0 : index
    %c0_16 = arith.constant 0 : index
    %40 = vector.load %arg6[%c0_15, %c0_16] : memref<1x512xf32, #tpu.memory_space<vmem>>, vector<1x512xf32>
    %41 = vector.broadcast %40 : vector<1x512xf32> to vector<4x512xf32>
    %42 = arith.addf %39, %41 : vector<4x512xf32>
    %43 = arith.mulf %42, %42 : vector<4x512xf32>
    %cst_17 = arith.constant dense<0.000000e+00> : vector<4xf32>
    %44 = vector.multi_reduction <add>, %43, %cst_17 [1] : vector<4x512xf32> to vector<4xf32>
    %45 = vector.shape_cast %44 : vector<4xf32> to vector<4x1xf32>
    %46 = math.rsqrt %45 : vector<4x1xf32>
    %47 = vector.broadcast %46 : vector<4x1xf32> to vector<4x512xf32>
    %48 = arith.mulf %42, %47 : vector<4x512xf32>
    %c0_18 = arith.constant 0 : index
    %49 = memref.load %arg0[%c0_18] : memref<1xf32, #tpu.memory_space<smem>>
    %50 = vector.broadcast %49 : f32 to vector<2x512xf32>
    %51 = arith.mulf %14, %50 : vector<2x512xf32>
    %cst_19 = arith.constant dense<0.000000e+00> : vector<2x4xf32>
    %52 = tpu.matmul %51, %48, %cst_19 {dimension_numbers = #tpu.dot_dimension_numbers<[1], [1], [0], [0], [0, 0, 1, 0], [], []>} : vector<2x512xf32>, vector<4x512xf32>, vector<2x4xf32> -> vector<2x4xf32>
    %c0_20 = arith.constant 0 : index
    %c0_21 = arith.constant 0 : index
    %53 = vector.load %arg7[%c0_20, %c0_21] : memref<2x4xf32, #tpu.memory_space<vmem>>, vector<2x4xf32>
    tpu.vector_store %arg7[%c0_20, %c0_21], %52 {strides = array<i32>} : memref<2x4xf32, #tpu.memory_space<vmem>>, vector<2x4xf32>,
    return
  }
}

</mosaic_0001>

<llo_original>
// kernel: mymodel_forward.1
$region0: #{mymodel_forward.1}
  #allocation0 [shape = 'u32[]', space=smem, size = 0x4, offset = 0x4, fixed_abs, tag = 'smem constant byte address 0x4 - core index']
  #allocation1 [shape = 'u32[144,128]{1,0:T(1,128)}', space=vmem, size = 0x12000, scoped, tag = 'internal scratch']
  #allocation2 [shape = 'f32[1]{0:T(128)S(6)}', space=smem, size = 0x200, scoped, tag = 'scoped memory for mymodel_forward.1']
  %s0 = inlined_call_operand.<no memory space> [shape: f32[1], index: 0, kind: input, shape index: {}]
  %s1 = inlined_call_operand.vmem [shape: s32[32,1], index: 1, kind: input, shape index: {}]
  %s2 = inlined_call_operand.vmem [shape: f32[2,256], index: 2, kind: input, shape index: {}]
  %s3 = inlined_call_operand.vmem [shape: bf16[256,512], index: 3, kind: input, shape index: {}]
  %s4 = inlined_call_operand.vmem [shape: f32[1,512], index: 4, kind: input, shape index: {}]
  %s5 = inlined_call_operand.vmem [shape: bf16[128,512], index: 5, kind: input, shape index: {}]
  %s6 = inlined_call_operand.vmem [shape: f32[1,512], index: 6, kind: input, shape index: {}]
  %s7 = inlined_call_operand.hbm [shape: f32[2,4], index: 7, kind: output, shape index: {}]
  %s8 = sld [smem:[#allocation0]]
  $region38: #{mymodel_forward.1} parent=0
    _
  %s10 = ssub.s32 1, %s8
  %s11 = scalar_select 0, %s10, %s8
  %12 = sst [smem:[#allocation2]] %s0
  $region1: #{mymodel_forward.1} parent=0
    #allocation3 [shape = 'u8[1024]{0}', space=vmem, size = 0x400, scoped, tag = 'output window, operand 0, single buffered']
    #allocation4 [shape = 's32[1]{0}', space=sflag, size = 0x4, scoped, tag = 'scoped memory for mymodel_forward.1']
    %13 = vsyncpa [#allocation4], 0
    // Predicated region
    $region2: #{mymodel_forward.1} parent=1 // pred_check
      _
    $region3: #{mymodel_forward.1} parent=1 // pred_check_branch
      %15 = sbr.rel (0) target = $region5
    $region4: #{mymodel_forward.1} parent=1 // pred_region
      _
    $region5: #{mymodel_forward.1} parent=1 // pred_fallthru
      _
    // Predicated region
    $region6: #{mymodel_forward.1} parent=1 // pred_check
      _
    $region7: #{mymodel_forward.1} parent=1 // pred_check_branch
      %17 = sbr.rel (0) target = $region9
    $region8: #{mymodel_forward.1} parent=1 // pred_region
      _
    $region9: #{mymodel_forward.1} parent=1 // pred_fallthru
      _
    // Predicated region
    $region10: #{mymodel_forward.1} parent=1 // pred_check
      _
    $region11: #{mymodel_forward.1} parent=1 // pred_check_branch
      %19 = sbr.rel (0) target = $region13
    $region12: #{mymodel_forward.1} parent=1 // pred_region
      _
    $region13: #{mymodel_forward.1} parent=1 // pred_fallthru
      _
    // Predicated region
    $region14: #{mymodel_forward.1} parent=1 // pred_check
      _
    $region15: #{mymodel_forward.1} parent=1 // pred_check_branch
      %21 = sbr.rel (0) target = $region17
    $region16: #{mymodel_forward.1} parent=1 // pred_region
      _
    $region17: #{mymodel_forward.1} parent=1 // pred_fallthru
      _
    // Predicated region
    $region18: #{mymodel_forward.1} parent=1 // pred_check
      _
    $region19: #{mymodel_forward.1} parent=1 // pred_check_branch
      %23 = sbr.rel (0) target = $region21
    $region20: #{mymodel_forward.1} parent=1 // pred_region
      _
    $region21: #{mymodel_forward.1} parent=1 // pred_fallthru
      _
    // Predicated region
    $region22: #{mymodel_forward.1} parent=1 // pred_check
      _
    $region23: #{mymodel_forward.1} parent=1 // pred_check_branch
      %25 = sbr.rel (0) target = $region25
    $region24: #{mymodel_forward.1} parent=1 // pred_region
      _
    $region25: #{mymodel_forward.1} parent=1 // pred_fallthru
      _
    // Predicated region
    $region26: #{mymodel_forward.1} parent=1 // pred_check
      _
    $region27: #{mymodel_forward.1} parent=1 // pred_check_branch
      %27 = sbr.rel (0) target = $region29
    $region28: #{mymodel_forward.1} parent=1 // pred_region
      _
    $region29: #{mymodel_forward.1} parent=1 // pred_fallthru
      _
    %v28 = vld [vmem:[%s2] sm:$0xf]
    %v29 = vld [vmem:[%s3] sm:$0xff]
    %v30 = vld [vmem:[%s3 + $0x8] sm:$0xff]
    %v31 = vld [vmem:[%s3 + $0x10] sm:$0xff]
    %v32 = vld [vmem:[%s3 + $0x18] sm:$0xff]
    %v33 = vld [vmem:[%s3 + $0x20] sm:$0xff]
    %v34 = vld [vmem:[%s3 + $0x28] sm:$0xff]
    %v35 = vld [vmem:[%s3 + $0x30] sm:$0xff]
    %v36 = vld [vmem:[%s3 + $0x38] sm:$0xff]
    %v37 = vld [vmem:[%s3 + $0x40] sm:$0xff]
    %v38 = vld [vmem:[%s3 + $0x48] sm:$0xff]
    %v39 = vld [vmem:[%s3 + $0x50] sm:$0xff]
    %v40 = vld [vmem:[%s3 + $0x58] sm:$0xff]
    %v41 = vld [vmem:[%s3 + $0x60] sm:$0xff]
    %v42 = vld [vmem:[%s3 + $0x68] sm:$0xff]
    %v43 = vld [vmem:[%s3 + $0x70] sm:$0xff]
    %v44 = vld [vmem:[%s3 + $0x78] sm:$0xff]
    %v45 = vld [vmem:[%s3 + $0x80] sm:$0xff]
    %v46 = vld [vmem:[%s3 + $0x88] sm:$0xff]
    %v47 = vld [vmem:[%s3 + $0x90] sm:$0xff]
    %v48 = vld [vmem:[%s3 + $0x98] sm:$0xff]
    %v49 = vld [vmem:[%s3 + $0xa0] sm:$0xff]
    %v50 = vld [vmem:[%s3 + $0xa8] sm:$0xff]
    %v51 = vld [vmem:[%s3 + $0xb0] sm:$0xff]
    %v52 = vld [vmem:[%s3 + $0xb8] sm:$0xff]
    %v53 = vld [vmem:[%s3 + $0xc0] sm:$0xff]
    %v54 = vld [vmem:[%s3 + $0xc8] sm:$0xff]
    %v55 = vld [vmem:[%s3 + $0xd0] sm:$0xff]
    %v56 = vld [vmem:[%s3 + $0xd8] sm:$0xff]
    %v57 = vld [vmem:[%s3 + $0xe0] sm:$0xff]
    %v58 = vld [vmem:[%s3 + $0xe8] sm:$0xff]
    %v59 = vld [vmem:[%s3 + $0xf0] sm:$0xff]
    %v60 = vld [vmem:[%s3 + $0xf8] sm:$0xff]
    %v61 = vld [vmem:[%s3 + $0x100] sm:$0xff]
    %v62 = vld [vmem:[%s3 + $0x108] sm:$0xff]
    %v63 = vld [vmem:[%s3 + $0x110] sm:$0xff]
    %v64 = vld [vmem:[%s3 + $0x118] sm:$0xff]
    %v65 = vld [vmem:[%s3 + $0x120] sm:$0xff]
    %v66 = vld [vmem:[%s3 + $0x128] sm:$0xff]
    %v67 = vld [vmem:[%s3 + $0x130] sm:$0xff]
    %v68 = vld [vmem:[%s3 + $0x138] sm:$0xff]
    %v69 = vld [vmem:[%s3 + $0x140] sm:$0xff]
    %v70 = vld [vmem:[%s3 + $0x148] sm:$0xff]
    %v71 = vld [vmem:[%s3 + $0x150] sm:$0xff]
    %v72 = vld [vmem:[%s3 + $0x158] sm:$0xff]
    %v73 = vld [vmem:[%s3 + $0x160] sm:$0xff]
    %v74 = vld [vmem:[%s3 + $0x168] sm:$0xff]
    %v75 = vld [vmem:[%s3 + $0x170] sm:$0xff]
    %v76 = vld [vmem:[%s3 + $0x178] sm:$0xff]
    %v77 = vld [vmem:[%s3 + $0x180] sm:$0xff]
    %v78 = vld [vmem:[%s3 + $0x188] sm:$0xff]
    %v79 = vld [vmem:[%s3 + $0x190] sm:$0xff]
    %v80 = vld [vmem:[%s3 + $0x198] sm:$0xff]
    %v81 = vld [vmem:[%s3 + $0x1a0] sm:$0xff]
    %v82 = vld [vmem:[%s3 + $0x1a8] sm:$0xff]
    %v83 = vld [vmem:[%s3 + $0x1b0] sm:$0xff]
    %v84 = vld [vmem:[%s3 + $0x1b8] sm:$0xff]
    %v85 = vld [vmem:[%s3 + $0x1c0] sm:$0xff]
    %v86 = vld [vmem:[%s3 + $0x1c8] sm:$0xff]
    %v87 = vld [vmem:[%s3 + $0x1d0] sm:$0xff]
    %v88 = vld [vmem:[%s3 + $0x1d8] sm:$0xff]
    %v89 = vld [vmem:[%s3 + $0x1e0] sm:$0xff]
    %v90 = vld [vmem:[%s3 + $0x1e8] sm:$0xff]
    %v91 = vld [vmem:[%s3 + $0x1f0] sm:$0xff]
    %v92 = vld [vmem:[%s3 + $0x1f8] sm:$0xff]
    %v93 = vunpack.c.l.bf16 %v29
    %v94 = vunpack.c.h.bf16 %v29
    %v95 = vunpack.c.l.bf16 %v30
    %v96 = vunpack.c.h.bf16 %v30
    %v97 = vunpack.c.l.bf16 %v31
    %v98 = vunpack.c.h.bf16 %v31
    %v99 = vunpack.c.l.bf16 %v32
    %v100 = vunpack.c.h.bf16 %v32
    %v101 = vunpack.c.l.bf16 %v33
    %v102 = vunpack.c.h.bf16 %v33
    %v103 = vunpack.c.l.bf16 %v34
    %v104 = vunpack.c.h.bf16 %v34
    %v105 = vunpack.c.l.bf16 %v35
    %v106 = vunpack.c.h.bf16 %v35
    %v107 = vunpack.c.l.bf16 %v36
    %v108 = vunpack.c.h.bf16 %v36
    %v109 = vunpack.c.l.bf16 %v37
    %v110 = vunpack.c.h.bf16 %v37
    %v111 = vunpack.c.l.bf16 %v38
    %v112 = vunpack.c.h.bf16 %v38
    %v113 = vunpack.c.l.bf16 %v39
    %v114 = vunpack.c.h.bf16 %v39
    %v115 = vunpack.c.l.bf16 %v40
    %v116 = vunpack.c.h.bf16 %v40
    %v117 = vunpack.c.l.bf16 %v41
    %v118 = vunpack.c.h.bf16 %v41
    %v119 = vunpack.c.l.bf16 %v42
    %v120 = vunpack.c.h.bf16 %v42
    %v121 = vunpack.c.l.bf16 %v43
    %v122 = vunpack.c.h.bf16 %v43
    %v123 = vunpack.c.l.bf16 %v44
    %v124 = vunpack.c.h.bf16 %v44
    %v125 = vunpack.c.l.bf16 %v45
    %v126 = vunpack.c.h.bf16 %v45
    %v127 = vunpack.c.l.bf16 %v46
    %v128 = vunpack.c.h.bf16 %v46
    %v129 = vunpack.c.l.bf16 %v47
    %v130 = vunpack.c.h.bf16 %v47
    %v131 = vunpack.c.l.bf16 %v48
    %v132 = vunpack.c.h.bf16 %v48
    %v133 = vunpack.c.l.bf16 %v49
    %v134 = vunpack.c.h.bf16 %v49
    %v135 = vunpack.c.l.bf16 %v50
    %v136 = vunpack.c.h.bf16 %v50
    %v137 = vunpack.c.l.bf16 %v51
    %v138 = vunpack.c.h.bf16 %v51
    %v139 = vunpack.c.l.bf16 %v52
    %v140 = vunpack.c.h.bf16 %v52
    %v141 = vunpack.c.l.bf16 %v53
    %v142 = vunpack.c.h.bf16 %v53
    %v143 = vunpack.c.l.bf16 %v54
    %v144 = vunpack.c.h.bf16 %v54
    %v145 = vunpack.c.l.bf16 %v55
    %v146 = vunpack.c.h.bf16 %v55
    %v147 = vunpack.c.l.bf16 %v56
    %v148 = vunpack.c.h.bf16 %v56
    %v149 = vunpack.c.l.bf16 %v57
    %v150 = vunpack.c.h.bf16 %v57
    %v151 = vunpack.c.l.bf16 %v58
    %v152 = vunpack.c.h.bf16 %v58
    %v153 = vunpack.c.l.bf16 %v59
    %v154 = vunpack.c.h.bf16 %v59
    %v155 = vunpack.c.l.bf16 %v60
    %v156 = vunpack.c.h.bf16 %v60
    %v157 = vunpack.c.l.bf16 %v61
    %v158 = vunpack.c.h.bf16 %v61
    %v159 = vunpack.c.l.bf16 %v62
    %v160 = vunpack.c.h.bf16 %v62
    %v161 = vunpack.c.l.bf16 %v63
    %v162 = vunpack.c.h.bf16 %v63
    %v163 = vunpack.c.l.bf16 %v64
    %v164 = vunpack.c.h.bf16 %v64
    %v165 = vunpack.c.l.bf16 %v65
    %v166 = vunpack.c.h.bf16 %v65
    %v167 = vunpack.c.l.bf16 %v66
    %v168 = vunpack.c.h.bf16 %v66
    %v169 = vunpack.c.l.bf16 %v67
    %v170 = vunpack.c.h.bf16 %v67
    %v171 = vunpack.c.l.bf16 %v68
    %v172 = vunpack.c.h.bf16 %v68
    %v173 = vunpack.c.l.bf16 %v69
    %v174 = vunpack.c.h.bf16 %v69
    %v175 = vunpack.c.l.bf16 %v70
    %v176 = vunpack.c.h.bf16 %v70
    %v177 = vunpack.c.l.bf16 %v71
    %v178 = vunpack.c.h.bf16 %v71
    %v179 = vunpack.c.l.bf16 %v72
    %v180 = vunpack.c.h.bf16 %v72
    %v181 = vunpack.c.l.bf16 %v73
    %v182 = vunpack.c.h.bf16 %v73
    %v183 = vunpack.c.l.bf16 %v74
    %v184 = vunpack.c.h.bf16 %v74
    %v185 = vunpack.c.l.bf16 %v75
    %v186 = vunpack.c.h.bf16 %v75
    %v187 = vunpack.c.l.bf16 %v76
    %v188 = vunpack.c.h.bf16 %v76
    %v189 = vunpack.c.l.bf16 %v77
    %v190 = vunpack.c.h.bf16 %v77
    %v191 = vunpack.c.l.bf16 %v78
    %v192 = vunpack.c.h.bf16 %v78
    %v193 = vunpack.c.l.bf16 %v79
    %v194 = vunpack.c.h.bf16 %v79
    %v195 = vunpack.c.l.bf16 %v80
    %v196 = vunpack.c.h.bf16 %v80
    %v197 = vunpack.c.l.bf16 %v81
    %v198 = vunpack.c.h.bf16 %v81
    %v199 = vunpack.c.l.bf16 %v82
    %v200 = vunpack.c.h.bf16 %v82
    %v201 = vunpack.c.l.bf16 %v83
    %v202 = vunpack.c.h.bf16 %v83
    %v203 = vunpack.c.l.bf16 %v84
    %v204 = vunpack.c.h.bf16 %v84
    %v205 = vunpack.c.l.bf16 %v85
    %v206 = vunpack.c.h.bf16 %v85
    %v207 = vunpack.c.l.bf16 %v86
    %v208 = vunpack.c.h.bf16 %v86
    %v209 = vunpack.c.l.bf16 %v87
    %v210 = vunpack.c.h.bf16 %v87
    %v211 = vunpack.c.l.bf16 %v88
    %v212 = vunpack.c.h.bf16 %v88
    %v213 = vunpack.c.l.bf16 %v89
    %v214 = vunpack.c.h.bf16 %v89
    %v215 = vunpack.c.l.bf16 %v90
    %v216 = vunpack.c.h.bf16 %v90
    %v217 = vunpack.c.l.bf16 %v91
    %v218 = vunpack.c.h.bf16 %v91
    %v219 = vunpack.c.l.bf16 %v92
    %v220 = vunpack.c.h.bf16 %v92
    %v221 = vld [vmem:[%s4] sm:$0xf]
    %v223 = vlaneseq
    %v224 = vshrl.u32 %v223, 7
    %v225 = vsub.s32 0, %v224
    %v226 = vrot.slane %v221, %v225
    %v227 = vlaneseq
    %v228 = vshrl.u32 %v227, 7
    %v229 = vsub.s32 1, %v228
    %v230 = vrot.slane %v221, %v229
    %v231 = vlaneseq
    %v232 = vshrl.u32 %v231, 7
    %v233 = vsub.s32 2, %v232
    %v234 = vrot.slane %v221, %v233
    %v235 = vlaneseq
    %v236 = vshrl.u32 %v235, 7
    %v237 = vsub.s32 3, %v236
    %v238 = vrot.slane %v221, %v237
    %v245 = vunpack.c.l.s4 1983009808
    %v246 = vunpack.c.0.s8 %v245
    %v247 = vlaneseq
    %v248 = vshrl.u32 %v247, 7
    %v249 = vsub.s32 %v246, %v248
    %v250 = vrot.slane %v28, %v249
    %v251 = vcombine.high %v250, %v250
    %254 = vmatprep.subr.mxu0 %v154
    %255 = vmatpush1.msra.mxu0 %v153
    %256 = vmatprep.subr.mxu0 %v150
    %257 = vmatpush1.msra.mxu0 %v149
    %258 = vmatprep.subr.mxu0 %v146
    %259 = vmatpush1.msra.mxu0 %v145
    %260 = vmatprep.subr.mxu0 %v142
    %261 = vmatpush1.msra.mxu0 %v141
    %262 = vmatprep.subr.mxu0 %v138
    %263 = vmatpush1.msra.mxu0 %v137
    %264 = vmatprep.subr.mxu0 %v134
    %265 = vmatpush1.msra.mxu0 %v133
    %266 = vmatprep.subr.mxu0 %v130
    %267 = vmatpush1.msra.mxu0 %v129
    %268 = vmatprep.subr.mxu0 %v126
    %269 = vmatpush1.msra.mxu0 %v125
    %270 = vmatprep.subr.mxu0 %v122
    %271 = vmatpush1.msra.mxu0 %v121
    %272 = vmatprep.subr.mxu0 %v118
    %273 = vmatpush1.msra.mxu0 %v117
    %274 = vmatprep.subr.mxu0 %v114
    %275 = vmatpush1.msra.mxu0 %v113
    %276 = vmatprep.subr.mxu0 %v110
    %277 = vmatpush1.msra.mxu0 %v109
    %278 = vmatprep.subr.mxu0 %v106
    %279 = vmatpush1.msra.mxu0 %v105
    %280 = vmatprep.subr.mxu0 %v102
    %281 = vmatpush1.msra.mxu0 %v101
    %282 = vmatprep.subr.mxu0 %v98
    %283 = vmatpush1.msra.mxu0 %v97
    %284 = vmatprep.subr.mxu0 %v94
    %285 = vmatpush1.msra.mxu0 %v93
    %286 = vmatprep.subr.mxu0 %v218
    %287 = vmatpush2.msra.mxu0 %v217
    %288 = vmatprep.subr.mxu0 %v214
    %289 = vmatpush2.msra.mxu0 %v213
    %290 = vmatprep.subr.mxu0 %v210
    %291 = vmatpush2.msra.mxu0 %v209
    %292 = vmatprep.subr.mxu0 %v206
    %293 = vmatpush2.msra.mxu0 %v205
    %294 = vmatprep.subr.mxu0 %v202
    %295 = vmatpush2.msra.mxu0 %v201
    %296 = vmatprep.subr.mxu0 %v198
    %297 = vmatpush2.msra.mxu0 %v197
    %298 = vmatprep.subr.mxu0 %v194
    %299 = vmatpush2.msra.mxu0 %v193
    %300 = vmatprep.subr.mxu0 %v190
    %301 = vmatpush2.msra.mxu0 %v189
    %302 = vmatprep.subr.mxu0 %v186
    %303 = vmatpush2.msra.mxu0 %v185
    %304 = vmatprep.subr.mxu0 %v182
    %305 = vmatpush2.msra.mxu0 %v181
    %306 = vmatprep.subr.mxu0 %v178
    %307 = vmatpush2.msra.mxu0 %v177
    %308 = vmatprep.subr.mxu0 %v174
    %309 = vmatpush2.msra.mxu0 %v173
    %310 = vmatprep.subr.mxu0 %v170
    %311 = vmatpush2.msra.mxu0 %v169
    %312 = vmatprep.subr.mxu0 %v166
    %313 = vmatpush2.msra.mxu0 %v165
    %314 = vmatprep.subr.mxu0 %v162
    %315 = vmatpush2.msra.mxu0 %v161
    %316 = vmatprep.subr.mxu0 %v158
    %317 = vmatpush2.msra.mxu0 %v157
    %318 = vmatprep.mubr.f32.mxu0 %v251
    %319 = vmatmul.mubr.f32.gmra.mxu0 %v250
    %v320 = vpop.f32.mrf.mxu0
    %v321 = vadd.f32 %v226, %v320
    %v322 = vpop.f32.mrf.mxu0
    %v323 = vadd.f32 %v230, %v322
    %324 = vdwg.mxu0
    %325 = vmatprep.subr.mxu0 %v156
    %326 = vmatpush1.msra.mxu0 %v155
    %327 = vmatprep.subr.mxu0 %v152
    %328 = vmatpush1.msra.mxu0 %v151
    %329 = vmatprep.subr.mxu0 %v148
    %330 = vmatpush1.msra.mxu0 %v147
    %331 = vmatprep.subr.mxu0 %v144
    %332 = vmatpush1.msra.mxu0 %v143
    %333 = vmatprep.subr.mxu0 %v140
    %334 = vmatpush1.msra.mxu0 %v139
    %335 = vmatprep.subr.mxu0 %v136
    %336 = vmatpush1.msra.mxu0 %v135
    %337 = vmatprep.subr.mxu0 %v132
    %338 = vmatpush1.msra.mxu0 %v131
    %339 = vmatprep.subr.mxu0 %v128
    %340 = vmatpush1.msra.mxu0 %v127
    %341 = vmatprep.subr.mxu0 %v124
    %342 = vmatpush1.msra.mxu0 %v123
    %343 = vmatprep.subr.mxu0 %v120
    %344 = vmatpush1.msra.mxu0 %v119
    %345 = vmatprep.subr.mxu0 %v116
    %346 = vmatpush1.msra.mxu0 %v115
    %347 = vmatprep.subr.mxu0 %v112
    %348 = vmatpush1.msra.mxu0 %v111
    %349 = vmatprep.subr.mxu0 %v108
    %350 = vmatpush1.msra.mxu0 %v107
    %351 = vmatprep.subr.mxu0 %v104
    %352 = vmatpush1.msra.mxu0 %v103
    %353 = vmatprep.subr.mxu0 %v100
    %354 = vmatpush1.msra.mxu0 %v99
    %355 = vmatprep.subr.mxu0 %v96
    %356 = vmatpush1.msra.mxu0 %v95
    %357 = vmatprep.subr.mxu0 %v220
    %358 = vmatpush2.msra.mxu0 %v219
    %359 = vmatprep.subr.mxu0 %v216
    %360 = vmatpush2.msra.mxu0 %v215
    %361 = vmatprep.subr.mxu0 %v212
    %362 = vmatpush2.msra.mxu0 %v211
    %363 = vmatprep.subr.mxu0 %v208
    %364 = vmatpush2.msra.mxu0 %v207
    %365 = vmatprep.subr.mxu0 %v204
    %366 = vmatpush2.msra.mxu0 %v203
    %367 = vmatprep.subr.mxu0 %v200
    %368 = vmatpush2.msra.mxu0 %v199
    %369 = vmatprep.subr.mxu0 %v196
    %370 = vmatpush2.msra.mxu0 %v195
    %371 = vmatprep.subr.mxu0 %v192
    %372 = vmatpush2.msra.mxu0 %v191
    %373 = vmatprep.subr.mxu0 %v188
    %374 = vmatpush2.msra.mxu0 %v187
    %375 = vmatprep.subr.mxu0 %v184
    %376 = vmatpush2.msra.mxu0 %v183
    %377 = vmatprep.subr.mxu0 %v180
    %378 = vmatpush2.msra.mxu0 %v179
    %379 = vmatprep.subr.mxu0 %v176
    %380 = vmatpush2.msra.mxu0 %v175
    %381 = vmatprep.subr.mxu0 %v172
    %382 = vmatpush2.msra.mxu0 %v171
    %383 = vmatprep.subr.mxu0 %v168
    %384 = vmatpush2.msra.mxu0 %v167
    %385 = vmatprep.subr.mxu0 %v164
    %386 = vmatpush2.msra.mxu0 %v163
    %387 = vmatprep.subr.mxu0 %v160
    %388 = vmatpush2.msra.mxu0 %v159
    %389 = vmatprep.mubr.f32.mxu0 %v251
    %390 = vmatmul.mubr.f32.gmra.mxu0 %v250
    %v391 = vpop.f32.mrf.mxu0
    %v392 = vadd.f32 %v234, %v391
    %v393 = vpop.f32.mrf.mxu0
    %v394 = vadd.f32 %v238, %v393
    %395 = vdwg.mxu0
    %v396 = vmul.f32 %v321, %v321
    %v397 = vmul.f32 %v323, %v323
    %v398 = vmul.f32 %v392, %v392
    %v399 = vmul.f32 %v394, %v394
    %vm400 = vcmask 1041408
    %v401 = vsel %vm400, %v396, 0.0
    %v402 = vsel %vm400, %v397, 0.0
    %v403 = vadd.f32 %v401, %v402
    %v404 = vsel %vm400, %v398, 0.0
    %v405 = vadd.f32 %v403, %v404
    %v406 = vsel %vm400, %v399, 0.0
    %v407 = vadd.f32 %v405, %v406
    %408 = vadd.xlane.f32.xlu0 %v407
    %v409 = vpop.xlane.xlu0 %408
    %v410 = vmax.f32 %v409, 1e-24
    %v411 = vrsqrt.pop %v410
    %v412 = vmul.f32 %v321, %v411
    %v413 = vmul.f32 %v323, %v411
    %v414 = vmul.f32 %v392, %v411
    %v415 = vmul.f32 %v394, %v411
    %v416 = vlaneseq
    %v417 = vand.u32 %v416, 127
    %v418 = vld [vmem:[%s1] sm:$0xff]
    %v419 = vld [vmem:[%s1 + $0x8] sm:$0xff]
    %v420 = vld [vmem:[%s1 + $0x10] sm:$0xff]
    %v421 = vld [vmem:[%s1 + $0x18] sm:$0xff]
    %422 = vset.pattern.permute.xlu0 0
    %423 = vperm.xlu0 %422, %v418
    %v424 = vpop.permute.xlu0 %423
    %425 = vset.pattern.permute.xlu0 0
    %426 = vperm.xlu0 %425, %v419
    %v427 = vpop.permute.xlu0 %426
    %428 = vset.pattern.permute.xlu0 0
    %429 = vperm.xlu0 %428, %v420
    %v430 = vpop.permute.xlu0 %429
    %431 = vset.pattern.permute.xlu0 0
    %432 = vperm.xlu0 %431, %v421
    %v433 = vpop.permute.xlu0 %432
    %vm434 = vcmp.eq.s32.totalorder %v424, %v417
    %vm435 = vcmp.eq.s32.totalorder %v427, %v417
    %vm436 = vcmp.eq.s32.totalorder %v430, %v417
    %vm437 = vcmp.eq.s32.totalorder %v433, %v417
    %v438 = vsel %vm434, 1, 0
    %v439 = vsel %vm435, 1, 0
    %v440 = vsel %vm436, 1, 0
    %v441 = vsel %vm437, 1, 0
    %v442 = vcvt.s32.f32 %v438
    %v443 = vcvt.s32.f32 %v439
    %v444 = vcvt.s32.f32 %v440
    %v445 = vcvt.s32.f32 %v441
    %v446 = vlaneseq
    %v447 = vshrl.u32 %v446, 7
    %v448 = vmul.u32 %v447, 8
    %vm449 = vcmp.ge.s32.totalorder %v417, %v448
    %v450 = vadd.s32 %v447, 1
    %v451 = vmul.u32 %v450, 8
    %vm452 = vcmp.lt.s32.totalorder %v417, %v451
    %vm453 = vmand %vm449, %vm452
    %v454 = vsel %vm453, 1, 0
    %v455 = vcvt.s32.f32 %v454
    %v456 = vmul.f32 %v455, 0.125
    %vm457 = vcmask 261120
    %v459 = vsel %vm457, %v456, 0
    %461 = vmatprep.subr.mxu0 0.0
    %462 = vmatpush1.msra.mxu0 0.0
    %463 = vmatprep.subr.mxu0 0.0
    %464 = vmatpush1.msra.mxu0 0.0
    %465 = vmatprep.subr.mxu0 0.0
    %466 = vmatpush1.msra.mxu0 0.0
    %467 = vmatprep.subr.mxu0 0.0
    %468 = vmatpush1.msra.mxu0 0.0
    %469 = vmatprep.subr.mxu0 0.0
    %470 = vmatpush1.msra.mxu0 0.0
    %471 = vmatprep.subr.mxu0 0.0
    %472 = vmatpush1.msra.mxu0 0.0
    %473 = vmatprep.subr.mxu0 0.0
    %474 = vmatpush1.msra.mxu0 0.0
    %475 = vmatprep.subr.mxu0 0.0
    %476 = vmatpush1.msra.mxu0 0.0
    %477 = vmatprep.subr.mxu0 0.0
    %478 = vmatpush1.msra.mxu0 0.0
    %479 = vmatprep.subr.mxu0 0.0
    %480 = vmatpush1.msra.mxu0 0.0
    %481 = vmatprep.subr.mxu0 0.0
    %482 = vmatpush1.msra.mxu0 0.0
    %483 = vmatprep.subr.mxu0 0.0
    %484 = vmatpush1.msra.mxu0 0.0
    %485 = vmatprep.subr.mxu0 0.0
    %486 = vmatpush1.msra.mxu0 %v445
    %487 = vmatprep.subr.mxu0 0.0
    %488 = vmatpush1.msra.mxu0 %v444
    %489 = vmatprep.subr.mxu0 0.0
    %490 = vmatpush1.msra.mxu0 %v443
    %491 = vmatprep.subr.mxu0 0.0
    %492 = vmatpush1.msra.mxu0 %v442
    %493 = vmatprep.subr.mxu0 0.0
    %494 = vmatpush2.msra.mxu0 0.0
    %495 = vmatprep.subr.mxu0 0.0
    %496 = vmatpush2.msra.mxu0 0.0
    %497 = vmatprep.subr.mxu0 0.0
    %498 = vmatpush2.msra.mxu0 0.0
    %499 = vmatprep.subr.mxu0 0.0
    %500 = vmatpush2.msra.mxu0 0.0
    %501 = vmatprep.subr.mxu0 0.0
    %502 = vmatpush2.msra.mxu0 0.0
    %503 = vmatprep.subr.mxu0 0.0
    %504 = vmatpush2.msra.mxu0 0.0
    %505 = vmatprep.subr.mxu0 0.0
    %506 = vmatpush2.msra.mxu0 0.0
    %507 = vmatprep.subr.mxu0 0.0
    %508 = vmatpush2.msra.mxu0 0.0
    %509 = vmatprep.subr.mxu0 0.0
    %510 = vmatpush2.msra.mxu0 0.0
    %511 = vmatprep.subr.mxu0 0.0
    %512 = vmatpush2.msra.mxu0 0.0
    %513 = vmatprep.subr.mxu0 0.0
    %514 = vmatpush2.msra.mxu0 0.0
    %515 = vmatprep.subr.mxu0 0.0
    %516 = vmatpush2.msra.mxu0 0.0
    %517 = vmatprep.subr.mxu0 0.0
    %518 = vmatpush2.msra.mxu0 0.0
    %519 = vmatprep.subr.mxu0 0.0
    %520 = vmatpush2.msra.mxu0 0.0
    %521 = vmatprep.subr.mxu0 0.0
    %522 = vmatpush2.msra.mxu0 0.0
    %523 = vmatprep.subr.mxu0 0.0
    %524 = vmatpush2.msra.mxu0 0.0
    %525 = vmatprep.mubr.f32.mxu0 0.0
    %526 = vmatmul.mubr.f32.gmra.mxu0 %v459
    %v527 = vpop.f32.mrf.mxu0
    %v528 = vadd.f32 0.0, %v527
    %v529 = vpop.f32.mrf.mxu0
    %530 = vdwg.mxu0
    %v531 = vld [vmem:[%s5] sm:$0xff]
    %v532 = vld [vmem:[%s5 + $0x8] sm:$0xff]
    %v533 = vld [vmem:[%s5 + $0x10] sm:$0xff]
    %v534 = vld [vmem:[%s5 + $0x18] sm:$0xff]
    %v535 = vld [vmem:[%s5 + $0x20] sm:$0xff]
    %v536 = vld [vmem:[%s5 + $0x28] sm:$0xff]
    %v537 = vld [vmem:[%s5 + $0x30] sm:$0xff]
    %v538 = vld [vmem:[%s5 + $0x38] sm:$0xff]
    %v539 = vld [vmem:[%s5 + $0x40] sm:$0xff]
    %v540 = vld [vmem:[%s5 + $0x48] sm:$0xff]
    %v541 = vld [vmem:[%s5 + $0x50] sm:$0xff]
    %v542 = vld [vmem:[%s5 + $0x58] sm:$0xff]
    %v543 = vld [vmem:[%s5 + $0x60] sm:$0xff]
    %v544 = vld [vmem:[%s5 + $0x68] sm:$0xff]
    %v545 = vld [vmem:[%s5 + $0x70] sm:$0xff]
    %v546 = vld [vmem:[%s5 + $0x78] sm:$0xff]
    %v547 = vld [vmem:[%s5 + $0x80] sm:$0xff]
    %v548 = vld [vmem:[%s5 + $0x88] sm:$0xff]
    %v549 = vld [vmem:[%s5 + $0x90] sm:$0xff]
    %v550 = vld [vmem:[%s5 + $0x98] sm:$0xff]
    %v551 = vld [vmem:[%s5 + $0xa0] sm:$0xff]
    %v552 = vld [vmem:[%s5 + $0xa8] sm:$0xff]
    %v553 = vld [vmem:[%s5 + $0xb0] sm:$0xff]
    %v554 = vld [vmem:[%s5 + $0xb8] sm:$0xff]
    %v555 = vld [vmem:[%s5 + $0xc0] sm:$0xff]
    %v556 = vld [vmem:[%s5 + $0xc8] sm:$0xff]
    %v557 = vld [vmem:[%s5 + $0xd0] sm:$0xff]
    %v558 = vld [vmem:[%s5 + $0xd8] sm:$0xff]
    %v559 = vld [vmem:[%s5 + $0xe0] sm:$0xff]
    %v560 = vld [vmem:[%s5 + $0xe8] sm:$0xff]
    %v561 = vld [vmem:[%s5 + $0xf0] sm:$0xff]
    %v562 = vld [vmem:[%s5 + $0xf8] sm:$0xff]
    %v563 = vunpack.c.l.bf16 %v531
    %v564 = vunpack.c.h.bf16 %v531
    %v565 = vunpack.c.l.bf16 %v532
    %v566 = vunpack.c.h.bf16 %v532
    %v567 = vunpack.c.l.bf16 %v533
    %v568 = vunpack.c.h.bf16 %v533
    %v569 = vunpack.c.l.bf16 %v534
    %v570 = vunpack.c.h.bf16 %v534
    %v571 = vunpack.c.l.bf16 %v535
    %v572 = vunpack.c.h.bf16 %v535
    %v573 = vunpack.c.l.bf16 %v536
    %v574 = vunpack.c.h.bf16 %v536
    %v575 = vunpack.c.l.bf16 %v537
    %v576 = vunpack.c.h.bf16 %v537
    %v577 = vunpack.c.l.bf16 %v538
    %v578 = vunpack.c.h.bf16 %v538
    %v579 = vunpack.c.l.bf16 %v539
    %v580 = vunpack.c.h.bf16 %v539
    %v581 = vunpack.c.l.bf16 %v540
    %v582 = vunpack.c.h.bf16 %v540
    %v583 = vunpack.c.l.bf16 %v541
    %v584 = vunpack.c.h.bf16 %v541
    %v585 = vunpack.c.l.bf16 %v542
    %v586 = vunpack.c.h.bf16 %v542
    %v587 = vunpack.c.l.bf16 %v543
    %v588 = vunpack.c.h.bf16 %v543
    %v589 = vunpack.c.l.bf16 %v544
    %v590 = vunpack.c.h.bf16 %v544
    %v591 = vunpack.c.l.bf16 %v545
    %v592 = vunpack.c.h.bf16 %v545
    %v593 = vunpack.c.l.bf16 %v546
    %v594 = vunpack.c.h.bf16 %v546
    %v595 = vunpack.c.l.bf16 %v547
    %v596 = vunpack.c.h.bf16 %v547
    %v597 = vunpack.c.l.bf16 %v548
    %v598 = vunpack.c.h.bf16 %v548
    %v599 = vunpack.c.l.bf16 %v549
    %v600 = vunpack.c.h.bf16 %v549
    %v601 = vunpack.c.l.bf16 %v550
    %v602 = vunpack.c.h.bf16 %v550
    %v603 = vunpack.c.l.bf16 %v551
    %v604 = vunpack.c.h.bf16 %v551
    %v605 = vunpack.c.l.bf16 %v552
    %v606 = vunpack.c.h.bf16 %v552
    %v607 = vunpack.c.l.bf16 %v553
    %v608 = vunpack.c.h.bf16 %v553
    %v609 = vunpack.c.l.bf16 %v554
    %v610 = vunpack.c.h.bf16 %v554
    %v611 = vunpack.c.l.bf16 %v555
    %v612 = vunpack.c.h.bf16 %v555
    %v613 = vunpack.c.l.bf16 %v556
    %v614 = vunpack.c.h.bf16 %v556
    %v615 = vunpack.c.l.bf16 %v557
    %v616 = vunpack.c.h.bf16 %v557
    %v617 = vunpack.c.l.bf16 %v558
    %v618 = vunpack.c.h.bf16 %v558
    %v619 = vunpack.c.l.bf16 %v559
    %v620 = vunpack.c.h.bf16 %v559
    %v621 = vunpack.c.l.bf16 %v560
    %v622 = vunpack.c.h.bf16 %v560
    %v623 = vunpack.c.l.bf16 %v561
    %v624 = vunpack.c.h.bf16 %v561
    %v625 = vunpack.c.l.bf16 %v562
    %v626 = vunpack.c.h.bf16 %v562
    %v627 = vld [vmem:[%s6] sm:$0xf]
    %v629 = vlaneseq
    %v630 = vshrl.u32 %v629, 7
    %v631 = vsub.s32 0, %v630
    %v632 = vrot.slane %v627, %v631
    %v633 = vlaneseq
    %v634 = vshrl.u32 %v633, 7
    %v635 = vsub.s32 1, %v634
    %v636 = vrot.slane %v627, %v635
    %v637 = vlaneseq
    %v638 = vshrl.u32 %v637, 7
    %v639 = vsub.s32 2, %v638
    %v640 = vrot.slane %v627, %v639
    %v641 = vlaneseq
    %v642 = vshrl.u32 %v641, 7
    %v643 = vsub.s32 3, %v642
    %v644 = vrot.slane %v627, %v643
    %649 = vmatprep.subr.mxu0 %v624
    %650 = vmatpush1.msra.mxu0 %v623
    %651 = vmatprep.subr.mxu0 %v620
    %652 = vmatpush1.msra.mxu0 %v619
    %653 = vmatprep.subr.mxu0 %v616
    %654 = vmatpush1.msra.mxu0 %v615
    %655 = vmatprep.subr.mxu0 %v612
    %656 = vmatpush1.msra.mxu0 %v611
    %657 = vmatprep.subr.mxu0 %v608
    %658 = vmatpush1.msra.mxu0 %v607
    %659 = vmatprep.subr.mxu0 %v604
    %660 = vmatpush1.msra.mxu0 %v603
    %661 = vmatprep.subr.mxu0 %v600
    %662 = vmatpush1.msra.mxu0 %v599
    %663 = vmatprep.subr.mxu0 %v596
    %664 = vmatpush1.msra.mxu0 %v595
    %665 = vmatprep.subr.mxu0 %v592
    %666 = vmatpush1.msra.mxu0 %v591
    %667 = vmatprep.subr.mxu0 %v588
    %668 = vmatpush1.msra.mxu0 %v587
    %669 = vmatprep.subr.mxu0 %v584
    %670 = vmatpush1.msra.mxu0 %v583
    %671 = vmatprep.subr.mxu0 %v580
    %672 = vmatpush1.msra.mxu0 %v579
    %673 = vmatprep.subr.mxu0 %v576
    %674 = vmatpush1.msra.mxu0 %v575
    %675 = vmatprep.subr.mxu0 %v572
    %676 = vmatpush1.msra.mxu0 %v571
    %677 = vmatprep.subr.mxu0 %v568
    %678 = vmatpush1.msra.mxu0 %v567
    %679 = vmatprep.subr.mxu0 %v564
    %680 = vmatpush1.msra.mxu0 %v563
    %681 = vmatprep.subr.mxu0 0.0
    %682 = vmatpush2.msra.mxu0 0.0
    %683 = vmatprep.subr.mxu0 0.0
    %684 = vmatpush2.msra.mxu0 0.0
    %685 = vmatprep.subr.mxu0 0.0
    %686 = vmatpush2.msra.mxu0 0.0
    %687 = vmatprep.subr.mxu0 0.0
    %688 = vmatpush2.msra.mxu0 0.0
    %689 = vmatprep.subr.mxu0 0.0
    %690 = vmatpush2.msra.mxu0 0.0
    %691 = vmatprep.subr.mxu0 0.0
    %692 = vmatpush2.msra.mxu0 0.0
    %693 = vmatprep.subr.mxu0 0.0
    %694 = vmatpush2.msra.mxu0 0.0
    %695 = vmatprep.subr.mxu0 0.0
    %696 = vmatpush2.msra.mxu0 0.0
    %697 = vmatprep.subr.mxu0 0.0
    %698 = vmatpush2.msra.mxu0 0.0
    %699 = vmatprep.subr.mxu0 0.0
    %700 = vmatpush2.msra.mxu0 0.0
    %701 = vmatprep.subr.mxu0 0.0
    %702 = vmatpush2.msra.mxu0 0.0
    %703 = vmatprep.subr.mxu0 0.0
    %704 = vmatpush2.msra.mxu0 0.0
    %705 = vmatprep.subr.mxu0 0.0
    %706 = vmatpush2.msra.mxu0 0.0
    %707 = vmatprep.subr.mxu0 0.0
    %708 = vmatpush2.msra.mxu0 0.0
    %709 = vmatprep.subr.mxu0 0.0
    %710 = vmatpush2.msra.mxu0 0.0
    %711 = vmatprep.subr.mxu0 0.0
    %712 = vmatpush2.msra.mxu0 0.0
    %713 = vmatprep.mubr.f32.mxu0 0.0
    %714 = vmatmul.mubr.f32.gmra.mxu0 %v528
    %v715 = vpop.f32.mrf.mxu0
    %v716 = vadd.f32 %v632, %v715
    %v717 = vpop.f32.mrf.mxu0
    %v718 = vadd.f32 %v636, %v717
    %719 = vdwg.mxu0
    %720 = vmatprep.subr.mxu0 %v626
    %721 = vmatpush1.msra.mxu0 %v625
    %722 = vmatprep.subr.mxu0 %v622
    %723 = vmatpush1.msra.mxu0 %v621
    %724 = vmatprep.subr.mxu0 %v618
    %725 = vmatpush1.msra.mxu0 %v617
    %726 = vmatprep.subr.mxu0 %v614
    %727 = vmatpush1.msra.mxu0 %v613
    %728 = vmatprep.subr.mxu0 %v610
    %729 = vmatpush1.msra.mxu0 %v609
    %730 = vmatprep.subr.mxu0 %v606
    %731 = vmatpush1.msra.mxu0 %v605
    %732 = vmatprep.subr.mxu0 %v602
    %733 = vmatpush1.msra.mxu0 %v601
    %734 = vmatprep.subr.mxu0 %v598
    %735 = vmatpush1.msra.mxu0 %v597
    %736 = vmatprep.subr.mxu0 %v594
    %737 = vmatpush1.msra.mxu0 %v593
    %738 = vmatprep.subr.mxu0 %v590
    %739 = vmatpush1.msra.mxu0 %v589
    %740 = vmatprep.subr.mxu0 %v586
    %741 = vmatpush1.msra.mxu0 %v585
    %742 = vmatprep.subr.mxu0 %v582
    %743 = vmatpush1.msra.mxu0 %v581
    %744 = vmatprep.subr.mxu0 %v578
    %745 = vmatpush1.msra.mxu0 %v577
    %746 = vmatprep.subr.mxu0 %v574
    %747 = vmatpush1.msra.mxu0 %v573
    %748 = vmatprep.subr.mxu0 %v570
    %749 = vmatpush1.msra.mxu0 %v569
    %750 = vmatprep.subr.mxu0 %v566
    %751 = vmatpush1.msra.mxu0 %v565
    %752 = vmatprep.subr.mxu0 0.0
    %753 = vmatpush2.msra.mxu0 0.0
    %754 = vmatprep.subr.mxu0 0.0
    %755 = vmatpush2.msra.mxu0 0.0
    %756 = vmatprep.subr.mxu0 0.0
    %757 = vmatpush2.msra.mxu0 0.0
    %758 = vmatprep.subr.mxu0 0.0
    %759 = vmatpush2.msra.mxu0 0.0
    %760 = vmatprep.subr.mxu0 0.0
    %761 = vmatpush2.msra.mxu0 0.0
    %762 = vmatprep.subr.mxu0 0.0
    %763 = vmatpush2.msra.mxu0 0.0
    %764 = vmatprep.subr.mxu0 0.0
    %765 = vmatpush2.msra.mxu0 0.0
    %766 = vmatprep.subr.mxu0 0.0
    %767 = vmatpush2.msra.mxu0 0.0
    %768 = vmatprep.subr.mxu0 0.0
    %769 = vmatpush2.msra.mxu0 0.0
    %770 = vmatprep.subr.mxu0 0.0
    %771 = vmatpush2.msra.mxu0 0.0
    %772 = vmatprep.subr.mxu0 0.0
    %773 = vmatpush2.msra.mxu0 0.0
    %774 = vmatprep.subr.mxu0 0.0
    %775 = vmatpush2.msra.mxu0 0.0
    %776 = vmatprep.subr.mxu0 0.0
    %777 = vmatpush2.msra.mxu0 0.0
    %778 = vmatprep.subr.mxu0 0.0
    %779 = vmatpush2.msra.mxu0 0.0
    %780 = vmatprep.subr.mxu0 0.0
    %781 = vmatpush2.msra.mxu0 0.0
    %782 = vmatprep.subr.mxu0 0.0
    %783 = vmatpush2.msra.mxu0 0.0
    %784 = vmatprep.mubr.f32.mxu0 0.0
    %785 = vmatmul.mubr.f32.gmra.mxu0 %v528
    %v786 = vpop.f32.mrf.mxu0
    %v787 = vadd.f32 %v640, %v786
    %v788 = vpop.f32.mrf.mxu0
    %v789 = vadd.f32 %v644, %v788
    %790 = vdwg.mxu0
    %v791 = vmul.f32 %v716, %v716
    %v792 = vmul.f32 %v718, %v718
    %v793 = vmul.f32 %v787, %v787
    %v794 = vmul.f32 %v789, %v789
    %vm795 = vcmask 1043456
    %v796 = vsel %vm795, %v791, 0.0
    %v797 = vsel %vm795, %v792, 0.0
    %v798 = vadd.f32 %v796, %v797
    %v799 = vsel %vm795, %v793, 0.0
    %v800 = vadd.f32 %v798, %v799
    %v801 = vsel %vm795, %v794, 0.0
    %v802 = vadd.f32 %v800, %v801
    %803 = vadd.xlane.f32.xlu0 %v802
    %v804 = vpop.xlane.xlu0 %803
    %v805 = vrsqrt.pop %v804
    %v806 = vmul.f32 %v716, %v805
    %v807 = vmul.f32 %v718, %v805
    %v808 = vmul.f32 %v787, %v805
    %v809 = vmul.f32 %v789, %v805
    %s810 = sld [smem:[#allocation2]]
    %v811 = vstv %s810
    %v812 = vmul.f32 %v412, %v811
    %v813 = vmul.f32 %v413, %v811
    %v814 = vmul.f32 %v414, %v811
    %v815 = vmul.f32 %v415, %v811
    %816 = vmatprep.subr.mxu0 0.0
    %817 = vmatpush1.xpose.msra.mxu0 0.0
    %818 = vmatprep.subr.mxu0 0.0
    %819 = vmatpush1.xpose.msra.mxu0 0.0
    %820 = vmatprep.subr.mxu0 0.0
    %821 = vmatpush1.xpose.msra.mxu0 0.0
    %822 = vmatprep.subr.mxu0 0.0
    %823 = vmatpush1.xpose.msra.mxu0 0.0
    %824 = vmatprep.subr.mxu0 0.0
    %825 = vmatpush1.xpose.msra.mxu0 0.0
    %826 = vmatprep.subr.mxu0 0.0
    %827 = vmatpush1.xpose.msra.mxu0 0.0
    %828 = vmatprep.subr.mxu0 0.0
    %829 = vmatpush1.xpose.msra.mxu0 0.0
    %830 = vmatprep.subr.mxu0 0.0
    %831 = vmatpush1.xpose.msra.mxu0 0.0
    %832 = vmatprep.subr.mxu0 0.0
    %833 = vmatpush1.xpose.msra.mxu0 0.0
    %834 = vmatprep.subr.mxu0 0.0
    %835 = vmatpush1.xpose.msra.mxu0 0.0
    %836 = vmatprep.subr.mxu0 0.0
    %837 = vmatpush1.xpose.msra.mxu0 0.0
    %838 = vmatprep.subr.mxu0 0.0
    %839 = vmatpush1.xpose.msra.mxu0 0.0
    %840 = vmatprep.subr.mxu0 0.0
    %841 = vmatpush1.xpose.msra.mxu0 0.0
    %842 = vmatprep.subr.mxu0 0.0
    %843 = vmatpush1.xpose.msra.mxu0 0.0
    %844 = vmatprep.subr.mxu0 0.0
    %845 = vmatpush1.xpose.msra.mxu0 0.0
    %846 = vmatprep.subr.mxu0 %v807
    %847 = vmatpush1.xpose.msra.mxu0 %v806
    %848 = vmatprep.subr.mxu0 0.0
    %849 = vmatpush2.xpose.msra.mxu0 0.0
    %850 = vmatprep.subr.mxu0 0.0
    %851 = vmatpush2.xpose.msra.mxu0 0.0
    %852 = vmatprep.subr.mxu0 0.0
    %853 = vmatpush2.xpose.msra.mxu0 0.0
    %854 = vmatprep.subr.mxu0 0.0
    %855 = vmatpush2.xpose.msra.mxu0 0.0
    %856 = vmatprep.subr.mxu0 0.0
    %857 = vmatpush2.xpose.msra.mxu0 0.0
    %858 = vmatprep.subr.mxu0 0.0
    %859 = vmatpush2.xpose.msra.mxu0 0.0
    %860 = vmatprep.subr.mxu0 0.0
    %861 = vmatpush2.xpose.msra.mxu0 0.0
    %862 = vmatprep.subr.mxu0 0.0
    %863 = vmatpush2.xpose.msra.mxu0 0.0
    %864 = vmatprep.subr.mxu0 0.0
    %865 = vmatpush2.xpose.msra.mxu0 0.0
    %866 = vmatprep.subr.mxu0 0.0
    %867 = vmatpush2.xpose.msra.mxu0 0.0
    %868 = vmatprep.subr.mxu0 0.0
    %869 = vmatpush2.xpose.msra.mxu0 0.0
    %870 = vmatprep.subr.mxu0 0.0
    %871 = vmatpush2.xpose.msra.mxu0 0.0
    %872 = vmatprep.subr.mxu0 0.0
    %873 = vmatpush2.xpose.msra.mxu0 0.0
    %874 = vmatprep.subr.mxu0 0.0
    %875 = vmatpush2.xpose.msra.mxu0 0.0
    %876 = vmatprep.subr.mxu0 0.0
    %877 = vmatpush2.xpose.msra.mxu0 0.0
    %878 = vmatprep.subr.mxu0 0.0
    %879 = vmatpush2.xpose.msra.mxu0 0.0
    %880 = vmatprep.mubr.f32.mxu0 %v813
    %881 = vmatmul.mubr.f32.gmra.mxu0 %v812
    %v882 = vpop.f32.mrf.mxu0
    %v883 = vadd.f32 0.0, %v882
    %v884 = vpop.f32.mrf.mxu0
    %885 = vdwg.mxu0
    %886 = vmatprep.subr.mxu0 0.0
    %887 = vmatpush1.xpose.msra.mxu0 0.0
    %888 = vmatprep.subr.mxu0 0.0
    %889 = vmatpush1.xpose.msra.mxu0 0.0
    %890 = vmatprep.subr.mxu0 0.0
    %891 = vmatpush1.xpose.msra.mxu0 0.0
    %892 = vmatprep.subr.mxu0 0.0
    %893 = vmatpush1.xpose.msra.mxu0 0.0
    %894 = vmatprep.subr.mxu0 0.0
    %895 = vmatpush1.xpose.msra.mxu0 0.0
    %896 = vmatprep.subr.mxu0 0.0
    %897 = vmatpush1.xpose.msra.mxu0 0.0
    %898 = vmatprep.subr.mxu0 0.0
    %899 = vmatpush1.xpose.msra.mxu0 0.0
    %900 = vmatprep.subr.mxu0 0.0
    %901 = vmatpush1.xpose.msra.mxu0 0.0
    %902 = vmatprep.subr.mxu0 0.0
    %903 = vmatpush1.xpose.msra.mxu0 0.0
    %904 = vmatprep.subr.mxu0 0.0
    %905 = vmatpush1.xpose.msra.mxu0 0.0
    %906 = vmatprep.subr.mxu0 0.0
    %907 = vmatpush1.xpose.msra.mxu0 0.0
    %908 = vmatprep.subr.mxu0 0.0
    %909 = vmatpush1.xpose.msra.mxu0 0.0
    %910 = vmatprep.subr.mxu0 0.0
    %911 = vmatpush1.xpose.msra.mxu0 0.0
    %912 = vmatprep.subr.mxu0 0.0
    %913 = vmatpush1.xpose.msra.mxu0 0.0
    %914 = vmatprep.subr.mxu0 0.0
    %915 = vmatpush1.xpose.msra.mxu0 0.0
    %916 = vmatprep.subr.mxu0 %v809
    %917 = vmatpush1.xpose.msra.mxu0 %v808
    %918 = vmatprep.subr.mxu0 0.0
    %919 = vmatpush2.xpose.msra.mxu0 0.0
    %920 = vmatprep.subr.mxu0 0.0
    %921 = vmatpush2.xpose.msra.mxu0 0.0
    %922 = vmatprep.subr.mxu0 0.0
    %923 = vmatpush2.xpose.msra.mxu0 0.0
    %924 = vmatprep.subr.mxu0 0.0
    %925 = vmatpush2.xpose.msra.mxu0 0.0
    %926 = vmatprep.subr.mxu0 0.0
    %927 = vmatpush2.xpose.msra.mxu0 0.0
    %928 = vmatprep.subr.mxu0 0.0
    %929 = vmatpush2.xpose.msra.mxu0 0.0
    %930 = vmatprep.subr.mxu0 0.0
    %931 = vmatpush2.xpose.msra.mxu0 0.0
    %932 = vmatprep.subr.mxu0 0.0
    %933 = vmatpush2.xpose.msra.mxu0 0.0
    %934 = vmatprep.subr.mxu0 0.0
    %935 = vmatpush2.xpose.msra.mxu0 0.0
    %936 = vmatprep.subr.mxu0 0.0
    %937 = vmatpush2.xpose.msra.mxu0 0.0
    %938 = vmatprep.subr.mxu0 0.0
    %939 = vmatpush2.xpose.msra.mxu0 0.0
    %940 = vmatprep.subr.mxu0 0.0
    %941 = vmatpush2.xpose.msra.mxu0 0.0
    %942 = vmatprep.subr.mxu0 0.0
    %943 = vmatpush2.xpose.msra.mxu0 0.0
    %944 = vmatprep.subr.mxu0 0.0
    %945 = vmatpush2.xpose.msra.mxu0 0.0
    %946 = vmatprep.subr.mxu0 0.0
    %947 = vmatpush2.xpose.msra.mxu0 0.0
    %948 = vmatprep.subr.mxu0 0.0
    %949 = vmatpush2.xpose.msra.mxu0 0.0
    %950 = vmatprep.mubr.f32.mxu0 %v815
    %951 = vmatmul.mubr.f32.gmra.mxu0 %v814
    %v952 = vpop.f32.mrf.mxu0
    %v953 = vadd.f32 %v883, %v952
    %v954 = vpop.f32.mrf.mxu0
    %955 = vdwg.mxu0
    %vm956 = vcmask 25600
    %957 = vst.msk [vmem:[#allocation3] sm:$0x3] %vm956, %v953
    // Predicated region
    $region30: #{mymodel_forward.1} parent=1 // pred_check
      _
    $region31: #{mymodel_forward.1} parent=1 // pred_check_branch
      %959 = sbr.rel (0) target = $region33
    $region32: #{mymodel_forward.1} parent=1 // pred_region
      %s961 = ssub.s32 32, 32
      %962 = vsyncadd [#allocation4], %s961
      %s964 = sshll.u32 [#allocation3], 4
      %s965 = int_to_ptr.vmem [resolvable:$true] %s964
      %967 = dma.vmem_to_hbm [thread:$0]  %s965, 32, %s7, [#allocation4]
    $region33: #{mymodel_forward.1} parent=1 // pred_fallthru
      _
    // Predicated region
    $region34: #{mymodel_forward.1} parent=1 // pred_check
      _
    $region35: #{mymodel_forward.1} parent=1 // pred_check_branch
      %969 = sbr.rel (0) target = $region37
    $region36: #{mymodel_forward.1} parent=1 // pred_region
      %970 = dma.done [#allocation4], 32
    $region37: #{mymodel_forward.1} parent=1 // pred_fallthru
      _
    %971 = vsyncpa [#allocation4], 1

</llo_original>
